<compile_context>
chip_gen: v5e
topology: v5e:2x2
jax: 0.10.0
libtpu: 0.0.40
codegen_flags: <defaults>
</compile_context>

<pallas_src>
import jax
import jax.numpy as jnp
from jax.experimental import pallas as pl
from jax.experimental.pallas import tpu as pltpu

GAMMA = 2.0   # gamma == 2 is hard-coded below as an explicit square
ALPHA = 0.25

LANES = 128
SUBLANES = 8
TARGET_BLOCK_ROWS = 4096   # (4096,128) f32 block = 2 MiB per input
NUM_PARTS = 2              # leading "parallel" grid axis (2 TCs on v7x; harmless on v5e/v6e)


def _focal_elementwise(x, t):
    """Per-element focal loss: alpha * (1 - pt)^2 * bce, with soft-label smoothing."""
    x = x.astype(jnp.float32)
    t = t.astype(jnp.float32) * 0.9 + 0.05
    # Numerically-stable BCE with logits (== F.binary_cross_entropy_with_logits):
    #   bce = max(x, 0) - x*t + log1p(exp(-|x|))
    bce = jnp.maximum(x, 0.0) - x * t + jnp.log1p(jnp.exp(-jnp.abs(x)))
    pt = jnp.exp(-bce)
    one_m_pt = 1.0 - pt
    # (1 - pt) ** GAMMA with GAMMA == 2 as an explicit square (avoids pow -> log+exp).
    return ALPHA * (one_m_pt * one_m_pt) * bce


def _make_kernel(block_rows, acc_rows, steps, lane_rows, needs_mask):
    """Kernel: accumulate per-block focal sums into the resident (acc_rows,128) output."""

    def kernel(x_ref, t_ref, out_ref):
        step = pl.program_id(1)

        @pl.when(step == 0)
        def _():
            out_ref[...] = jnp.zeros_like(out_ref)

        focal = _focal_elementwise(x_ref[...], t_ref[...])

        if needs_mask:
            # Mask on ABSOLUTE (unclamped) row index: rows of partial / duplicated
            # (index-clamped) blocks contribute exactly zero.
            blk = pl.program_id(0) * steps + step
            row0 = blk * block_rows
            rows = row0 + jax.lax.broadcasted_iota(jnp.int32, (block_rows, LANES), 0)
            focal = jnp.where(rows < lane_rows, focal, 0.0)

        # Fold (block_rows,128) -> (acc_rows,128) with pure-VPU vreg adds; the
        # reshape groups whole sublane tiles so it is layout-free, and no
        # cross-lane work happens inside the grid loop.
        out_ref[...] += jnp.sum(focal.reshape(-1, acc_rows, LANES), axis=0)

    return kernel


def _round_up(a, b):
    return ((a + b - 1) // b) * b


def _row_granule(*dtypes):
    """Block-row granularity so sub-32-bit inputs stay sublane-packed."""
    g = SUBLANES
    for dt in dtypes:
        g = max(g, SUBLANES * max(1, 4 // jnp.dtype(dt).itemsize))
    return g


def focal_loss(inputs, targets):
    """Mean focal loss over all elements (any shape); returns scalar f32."""
    assert inputs.shape == targets.shape
    total = inputs.size
    x_flat = inputs.reshape(-1)
    t_flat = targets.reshape(-1)

    granule = _row_granule(inputs.dtype, targets.dtype)

    # TODO(synk): non-128-divisible element counts could use a 1D BlockSpec
    # (reshape inside the kernel) to avoid any HBM copy; to keep the fast path
    # copy-free we fall back to plain fused XLA for those rare shapes.
    if total % LANES != 0 or (total // LANES) < granule:
        return jnp.sum(_focal_elementwise(x_flat, t_flat)) / jnp.float32(total)

    lane_rows = total // LANES
    parts = NUM_PARTS if lane_rows >= NUM_PARTS * granule else 1
    block_rows = min(TARGET_BLOCK_ROWS,
                     _round_up(pl.cdiv(lane_rows, parts), granule))
    nb = pl.cdiv(lane_rows, block_rows)     # blocks that actually contain data
    steps = pl.cdiv(nb, parts)              # uniform steps per part
    needs_mask = (parts * steps * block_rows != lane_rows)
    acc_rows = next(c for c in (64, 32, 16, SUBLANES) if block_rows % c == 0)

    # Lane-dense 2D view; total % 128 == 0 so this is a full-range, copy-free reshape.
    x2d = x_flat.reshape(lane_rows, LANES)
    t2d = t_flat.reshape(lane_rows, LANES)

    if needs_mask:
        # Clamp so no block ever starts fully out of bounds (duplicate / padded
        # rows are zeroed by the in-kernel mask). p*steps+i keeps each part's
        # HBM stream contiguous.
        def in_index(p, i):
            return (jnp.minimum(p * steps + i, nb - 1), 0)
    else:
        def in_index(p, i):
            return (p * steps + i, 0)

    n_elems = lane_rows * LANES
    cost = pl.CostEstimate(
        flops=int(14 * n_elems),
        transcendentals=int(3 * n_elems),
        bytes_accessed=int(n_elems * (x2d.dtype.itemsize + t2d.dtype.itemsize)
                           + parts * acc_rows * LANES * 4),
    )

    part_acc = pl.pallas_call(
        _make_kernel(block_rows, acc_rows, steps, lane_rows, needs_mask),
        out_shape=jax.ShapeDtypeStruct((parts, acc_rows, LANES), jnp.float32),
        grid=(parts, steps),
        in_specs=[
            pl.BlockSpec((block_rows, LANES), in_index),
            pl.BlockSpec((block_rows, LANES), in_index),
        ],
        out_specs=pl.BlockSpec((None, acc_rows, LANES), lambda p, i: (p, 0, 0)),
        compiler_params=pltpu.CompilerParams(
            dimension_semantics=("parallel", "arbitrary")),
        cost_estimate=cost,
    )(x2d, t2d)

    # Tiny cross-part / cross-lane reduce + global mean (fused by XLA).
    return jnp.sum(part_acc) / jnp.float32(total)


def _ref_focal_loss(inputs, targets):
    return jnp.mean(_focal_elementwise(inputs, targets))


if __name__ == "__main__":
    key = jax.random.PRNGKey(0)
    k1, k2 = jax.random.split(key)
    # Small segmentation-style shapes: NCHW logits + binary targets.
    B, C, H, W = 2, 4, 16, 16
    inputs = jax.random.normal(k1, (B, C, H, W), dtype=jnp.float32)
    targets = (jax.random.uniform(k2, (B, C, H, W)) > 0.5).astype(jnp.float32)

    loss = focal_loss(inputs, targets)
    jax.block_until_ready(loss)

    ref = _ref_focal_loss(inputs, targets)
    assert jnp.allclose(loss, ref, atol=1e-5, rtol=1e-5), (loss, ref)
    print("KERNEL_OK")
</pallas_src>

<mosaic_0001>
module attributes {stable_mosaic.version = 11 : i64} {
  func.func @kernel(%arg0: i32, %arg1: i32, %arg2: memref<8x128xf32, #tpu.memory_space<vmem>>, %arg3: memref<8x128xf32, #tpu.memory_space<vmem>>, %arg4: memref<1x8x128xf32, #tpu.memory_space<vmem>>) attributes {dimension_semantics = [#tpu.dimension_semantics<parallel>, #tpu.dimension_semantics<arbitrary>], iteration_bounds = array<i64: 2, 1>, scalar_prefetch = 0 : i64, scratch_operands = 0 : i64, tpu.core_type = #tpu.core_type<tc>, window_params = [{transform_indices = @transform_0, window_bounds = array<i64: 8, 128>}, {transform_indices = @transform_1, window_bounds = array<i64: 8, 128>}, {transform_indices = @transform_2, window_bounds = array<i64: 1, 8, 128>}]} {
    %c0_i32 = arith.constant 0 : i32
    %0 = arith.cmpi eq, %arg1, %c0_i32 : i32
    %1 = arith.extui %0 : i1 to i32
    %c0_i32_0 = arith.constant 0 : i32
    %2 = arith.cmpi ne, %1, %c0_i32_0 : i32
    scf.if %2 {
      %cst_17 = arith.constant 0.000000e+00 : f32
      %36 = vector.broadcast %cst_17 : f32 to vector<8x128xf32>
      %c0_18 = arith.constant 0 : index
      %c0_19 = arith.constant 0 : index
      %c0_20 = arith.constant 0 : index
      %37 = vector.load %arg4[%c0_18, %c0_19, %c0_20] : memref<1x8x128xf32, #tpu.memory_space<vmem>>, vector<1x8x128xf32>
      %38 = vector.shape_cast %37 : vector<1x8x128xf32> to vector<8x128xf32>
      %39 = vector.shape_cast %36 : vector<8x128xf32> to vector<1x8x128xf32>
      tpu.vector_store %arg4[%c0_18, %c0_19, %c0_20], %39 {strides = array<i32>} : memref<1x8x128xf32, #tpu.memory_space<vmem>>, vector<1x8x128xf32>,
    } else {
    }
    %c0 = arith.constant 0 : index
    %c0_1 = arith.constant 0 : index
    %3 = vector.load %arg2[%c0, %c0_1] : memref<8x128xf32, #tpu.memory_space<vmem>>, vector<8x128xf32>
    %c0_2 = arith.constant 0 : index
    %c0_3 = arith.constant 0 : index
    %4 = vector.load %arg3[%c0_2, %c0_3] : memref<8x128xf32, #tpu.memory_space<vmem>>, vector<8x128xf32>
    %cst = arith.constant 0.899999976 : f32
    %5 = vector.broadcast %cst : f32 to vector<8x128xf32>
    %6 = arith.mulf %4, %5 : vector<8x128xf32>
    %cst_4 = arith.constant 5.000000e-02 : f32
    %7 = vector.broadcast %cst_4 : f32 to vector<8x128xf32>
    %8 = arith.addf %6, %7 : vector<8x128xf32>
    %cst_5 = arith.constant 0.000000e+00 : f32
    %9 = vector.broadcast %cst_5 : f32 to vector<8x128xf32>
    %10 = arith.maximumf %3, %9 : vector<8x128xf32>
    %11 = arith.mulf %3, %8 : vector<8x128xf32>
    %12 = arith.subf %10, %11 : vector<8x128xf32>
    %13 = math.absf %3 : vector<8x128xf32>
    %cst_6 = arith.constant 0.000000e+00 : f32
    %14 = vector.broadcast %cst_6 : f32 to vector<8x128xf32>
    %15 = arith.subf %14, %13 : vector<8x128xf32>
    %16 = math.exp %15 : vector<8x128xf32>
    %17 = math.log1p %16 : vector<8x128xf32>
    %18 = arith.addf %12, %17 : vector<8x128xf32>
    %cst_7 = arith.constant 0.000000e+00 : f32
    %19 = vector.broadcast %cst_7 : f32 to vector<8x128xf32>
    %20 = arith.subf %19, %18 : vector<8x128xf32>
    %21 = math.exp %20 : vector<8x128xf32>
    %cst_8 = arith.constant 1.000000e+00 : f32
    %22 = vector.broadcast %cst_8 : f32 to vector<8x128xf32>
    %23 = arith.subf %22, %21 : vector<8x128xf32>
    %24 = arith.mulf %23, %23 : vector<8x128xf32>
    %cst_9 = arith.constant 2.500000e-01 : f32
    %25 = vector.broadcast %cst_9 : f32 to vector<8x128xf32>
    %26 = arith.mulf %25, %24 : vector<8x128xf32>
    %27 = arith.mulf %26, %18 : vector<8x128xf32>
    %c0_10 = arith.constant 0 : index
    %c0_11 = arith.constant 0 : index
    %c0_12 = arith.constant 0 : index
    %28 = vector.load %arg4[%c0_10, %c0_11, %c0_12] : memref<1x8x128xf32, #tpu.memory_space<vmem>>, vector<1x8x128xf32>
    %29 = vector.shape_cast %28 : vector<1x8x128xf32> to vector<8x128xf32>
    %30 = vector.shape_cast %27 : vector<8x128xf32> to vector<1x8x128xf32>
    %cst_13 = arith.constant dense<0.000000e+00> : vector<8x128xf32>
    %31 = vector.multi_reduction <add>, %30, %cst_13 [0] : vector<1x8x128xf32> to vector<8x128xf32>
    %32 = arith.addf %29, %31 : vector<8x128xf32>
    %c0_14 = arith.constant 0 : index
    %c0_15 = arith.constant 0 : index
    %c0_16 = arith.constant 0 : index
    %33 = vector.load %arg4[%c0_14, %c0_15, %c0_16] : memref<1x8x128xf32, #tpu.memory_space<vmem>>, vector<1x8x128xf32>
    %34 = vector.shape_cast %33 : vector<1x8x128xf32> to vector<8x128xf32>
    %35 = vector.shape_cast %32 : vector<8x128xf32> to vector<1x8x128xf32>
    tpu.vector_store %arg4[%c0_14, %c0_15, %c0_16], %35 {strides = array<i32>} : memref<1x8x128xf32, #tpu.memory_space<vmem>>, vector<1x8x128xf32>,
    return
  }
  func.func @transform_0(%arg0: i32, %arg1: i32) -> (i32, i32) {
    %c1_i32 = arith.constant 1 : i32
    %0 = arith.muli %arg0, %c1_i32 : i32
    %1 = arith.addi %0, %arg1 : i32
    %c0_i32 = arith.constant 0 : i32
    %c0_i32_0 = arith.constant 0 : i32
    return %1, %c0_i32 : i32, i32
  }
  func.func @transform_1(%arg0: i32, %arg1: i32) -> (i32, i32) {
    %c1_i32 = arith.constant 1 : i32
    %0 = arith.muli %arg0, %c1_i32 : i32
    %1 = arith.addi %0, %arg1 : i32
    %c0_i32 = arith.constant 0 : i32
    %c0_i32_0 = arith.constant 0 : i32
    return %1, %c0_i32 : i32, i32
  }
  func.func @transform_2(%arg0: i32, %arg1: i32) -> (i32, i32, i32) {
    %c0_i32 = arith.constant 0 : i32
    %c0_i32_0 = arith.constant 0 : i32
    %c0_i32_1 = arith.constant 0 : i32
    return %arg0, %c0_i32, %c0_i32_0 : i32, i32, i32
  }
}

</mosaic_0001>

<llo_original>
// kernel: tpu_custom_call.1
$region0: #{tpu_custom_call.1}
  #allocation0 [shape = 'u32[]', space=smem, size = 0x4, offset = 0x4, fixed_abs, tag = 'smem constant byte address 0x4 - core index']
  #allocation1 [shape = 'u32[72,128]{1,0:T(1,128)}', space=vmem, size = 0x9000, scoped, tag = 'internal scratch']
  %s0 = inlined_call_operand.hbm [shape: f32[16,128], index: 0, kind: input, shape index: {}]
  %s1 = inlined_call_operand.hbm [shape: f32[16,128], index: 1, kind: input, shape index: {}]
  %s2 = inlined_call_operand.hbm [shape: f32[2,8,128], index: 2, kind: output, shape index: {}]
  %s3 = sld [smem:[#allocation0]]
  $region53: #{tpu_custom_call.1} parent=0
    _
  %s5 = ssub.s32 1, %s3
  %s6 = scalar_select 0, %s5, %s3
  $region1: #{tpu_custom_call.1} parent=0
    #allocation2 [shape = 'u8[8192]{0}', space=vmem, size = 0x2000, scoped, tag = 'input window, operand 0']
    #allocation3 [shape = 's32[2]{0}', space=sflag, size = 0x8, scoped, tag = 'scoped memory for tpu_custom_call.1']
    #allocation4 [shape = 's32[2]{0}', space=sflag, size = 0x8, scoped, tag = 'scoped memory for tpu_custom_call.1']
    #allocation5 [shape = 'u8[8192]{0}', space=vmem, size = 0x2000, scoped, tag = 'input window, operand 1']
    #allocation6 [shape = 's32[2]{0}', space=sflag, size = 0x8, scoped, tag = 'scoped memory for tpu_custom_call.1']
    #allocation7 [shape = 'u8[8192]{0}', space=vmem, size = 0x2000, scoped, tag = 'output window, operand 0']
    %7 = vsyncpa [#allocation3], 0
    %s8 = scalar_lea.sflag [#allocation3], 1
    %9 = vsyncpa %s8, 0
    %10 = vsyncpa [#allocation6], 0
    %s11 = scalar_lea.sflag [#allocation6], 1
    %12 = vsyncpa %s11, 0
    %13 = vsyncpa [#allocation4], 0
    %s14 = scalar_lea.sflag [#allocation4], 1
    %15 = vsyncpa %s14, 0
    loop: start=0, step=1, limit=4
    $region2: #{tpu_custom_call.1} parent=1 // loop_pre_header
      _
    $region3: #{tpu_custom_call.1} parent=1 // loop_header
      %s17 = sphi 0, %s21
      %p18 = scmp.ge.s32.totalorder %s17, 4
      %s24 = sphi 0, %s36
      %s25 = sphi 0, %s32
      %s26 = sphi 0, %s24
      %s27 = sphi 0, %s25
      %s28 = sphi 0, %s26
      %s29 = sphi 0, %s27
      %s41 = sphi 0, %s43
      %s44 = sphi 0, %s41
      %s45 = sphi 0, %s44
      %s61 = sphi 0, %s45
      %s69 = sphi 0, %s71
      %s72 = sphi 0, %s69
      %s73 = sphi 0, %s72
      %s89 = sphi 0, %s73
      %s95 = sphi 0, %s97
      %s98 = sphi 0, %s95
      %s99 = sphi 0, %s98
      %s115 = sphi 0, %s99
    $region4: #{tpu_custom_call.1} parent=1 // loop_header_branch
      %20 = sbr.rel (%p18) target = $region8
    $region5: #{tpu_custom_call.1} parent=1 // loop_body
      %s22 = ssub.s32 %s17, 1
      %s23 = ssub.s32 %s17, 2
      %s30 = sadd.s32 1, %s25
      %p31 = scmp.ge.s32.totalorder %s30, 1
      %s32 = scalar_select %p31, 0, %s30
      %s33 = sadd.s32 1, %s24
      %s34 = scalar_select %p31, %s33, %s24
      %p35 = scmp.ge.s32.totalorder %s34, 2
      %s36 = scalar_select %p35, 0, %s34
      %s37 = sadd.s32 %s24, %s25
      %s38 = sadd.s32 %s36, %s32
      %s39 = ssub.s32 %s37, %s38
      %p40 = scmp.eq.s32.totalorder %s39, 0
      %s42 = sadd.s32 %s41, 1
      %s43 = scalar_select %p40, %s41, %s42
      %p46 = pneg %p40
      %p47 = scmp.eq.s32.totalorder %s17, 1
      %p48 = por %p46, %p47
      %p49 = scmp.ne.s32.totalorder %s41, %s44
      %p50 = scmp.eq.s32.totalorder %s17, 0
      %p51 = por %p49, %p50
      %p52 = scmp.ne.s32.totalorder %s41, %s44
      %p53 = scmp.eq.s32.totalorder %s22, 1
      %p54 = por %p52, %p53
      %p55 = scmp.ne.s32.totalorder %s44, %s45
      %p56 = scmp.eq.s32.totalorder %s22, 0
      %p57 = por %p55, %p56
      %p58 = scmp.ne.s32.totalorder %s44, %s45
      %p59 = scmp.eq.s32.totalorder %s23, 1
      %p60 = por %p58, %p59
      %p62 = scmp.ne.s32.totalorder %s45, %s61
      %p63 = scmp.eq.s32.totalorder %s23, 0
      %p64 = por %p62, %p63
      %s65 = sadd.s32 %s24, %s25
      %s66 = sadd.s32 %s36, %s32
      %s67 = ssub.s32 %s65, %s66
      %p68 = scmp.eq.s32.totalorder %s67, 0
      %s70 = sadd.s32 %s69, 1
      %s71 = scalar_select %p68, %s69, %s70
      %p74 = pneg %p68
      %p75 = scmp.eq.s32.totalorder %s17, 1
      %p76 = por %p74, %p75
      %p77 = scmp.ne.s32.totalorder %s69, %s72
      %p78 = scmp.eq.s32.totalorder %s17, 0
      %p79 = por %p77, %p78
      %p80 = scmp.ne.s32.totalorder %s69, %s72
      %p81 = scmp.eq.s32.totalorder %s22, 1
      %p82 = por %p80, %p81
      %p83 = scmp.ne.s32.totalorder %s72, %s73
      %p84 = scmp.eq.s32.totalorder %s22, 0
      %p85 = por %p83, %p84
      %p86 = scmp.ne.s32.totalorder %s72, %s73
      %p87 = scmp.eq.s32.totalorder %s23, 1
      %p88 = por %p86, %p87
      %p90 = scmp.ne.s32.totalorder %s73, %s89
      %p91 = scmp.eq.s32.totalorder %s23, 0
      %p92 = por %p90, %p91
      %s93 = ssub.s32 %s24, %s36
      %p94 = scmp.eq.s32.totalorder %s93, 0
      %s96 = sadd.s32 %s95, 1
      %s97 = scalar_select %p94, %s95, %s96
      %p100 = pneg %p94
      %p101 = scmp.eq.s32.totalorder %s17, 1
      %p102 = por %p100, %p101
      %p103 = scmp.ne.s32.totalorder %s95, %s98
      %p104 = scmp.eq.s32.totalorder %s17, 0
      %p105 = por %p103, %p104
      %p106 = scmp.ne.s32.totalorder %s95, %s98
      %p107 = scmp.eq.s32.totalorder %s22, 1
      %p108 = por %p106, %p107
      %p109 = scmp.ne.s32.totalorder %s98, %s99
      %p110 = scmp.eq.s32.totalorder %s22, 0
      %p111 = por %p109, %p110
      %p112 = scmp.ne.s32.totalorder %s98, %s99
      %p113 = scmp.eq.s32.totalorder %s23, 1
      %p114 = por %p112, %p113
      %p116 = scmp.ne.s32.totalorder %s99, %s115
      %p117 = scmp.eq.s32.totalorder %s23, 0
      %p118 = por %p116, %p117
      %p119 = scmp.le.s32.totalorder 1, %s17
      %p120 = scmp.lt.s32.totalorder %s17, 3
      %p121 = pnand %p119, %p120
      %p122 = pneg %p121
      // Predicated region
      $region9: #{tpu_custom_call.1} parent=5 // pred_check
        _
      $region10: #{tpu_custom_call.1} parent=5 // pred_check_branch
        %124 = sbr.rel (%p121) target = $region12
      $region11: #{tpu_custom_call.1} parent=5 // pred_region
        %s125 = ssub.s32 %s17, 1
      $region12: #{tpu_custom_call.1} parent=5 // pred_fallthru
        _
      %p126 = scmp.lt.s32.totalorder %s17, 2
      // Predicated region
      $region13: #{tpu_custom_call.1} parent=5 // pred_check
        %p127 = pneg %p126
      $region14: #{tpu_custom_call.1} parent=5 // pred_check_branch
        %129 = sbr.rel (%p127) target = $region16
      $region15: #{tpu_custom_call.1} parent=5 // pred_region
        // Predicated region
        $region17: #{tpu_custom_call.1} parent=15 // pred_check
          %p130 = pneg %p51
        $region18: #{tpu_custom_call.1} parent=15 // pred_check_branch
          %132 = sbr.rel (%p130) target = $region20
        $region19: #{tpu_custom_call.1} parent=15 // pred_region
          %s133 = sand.u32 %s41, 1
          %s134 = scalar_lea.sflag [#allocation3], %s133
          %s135 = sand.u32 %s41, 1
          %s136 = smul.addr %s135, 8
          %s137 = scalar_lea.vmem [#allocation2], %s136
          %s138 = sadd.s32 %s24, %s25
          %140 = vsyncadd %s134, 0
          %s141 = smul.addr %s138, 8
          %s142 = scalar_lea.hbm %s0, %s141
          %s144 = sshll.u32 %s142, 4
          %s145 = int_to_ptr.hbm [resolvable:$true] %s144
          %s146 = sshll.u32 %s137, 4
          %s147 = int_to_ptr.vmem [resolvable:$true] %s146
          %149 = dma.hbm_to_vmem [thread:$0]  %s145, 128, %s147, %s134
        $region20: #{tpu_custom_call.1} parent=15 // pred_fallthru
          _
        // Predicated region
        $region21: #{tpu_custom_call.1} parent=15 // pred_check
          %p150 = pneg %p79
        $region22: #{tpu_custom_call.1} parent=15 // pred_check_branch
          %152 = sbr.rel (%p150) target = $region24
        $region23: #{tpu_custom_call.1} parent=15 // pred_region
          %s153 = sand.u32 %s69, 1
          %s154 = scalar_lea.sflag [#allocation6], %s153
          %s155 = sand.u32 %s69, 1
          %s156 = smul.addr %s155, 8
          %s157 = scalar_lea.vmem [#allocation5], %s156
          %s158 = sadd.s32 %s24, %s25
          %160 = vsyncadd %s154, 0
          %s161 = smul.addr %s158, 8
          %s162 = scalar_lea.hbm %s1, %s161
          %s164 = sshll.u32 %s162, 4
          %s165 = int_to_ptr.hbm [resolvable:$true] %s164
          %s166 = sshll.u32 %s157, 4
          %s167 = int_to_ptr.vmem [resolvable:$true] %s166
          %169 = dma.hbm_to_vmem [thread:$0]  %s165, 128, %s167, %s154
        $region24: #{tpu_custom_call.1} parent=15 // pred_fallthru
          _
      $region16: #{tpu_custom_call.1} parent=5 // pred_fallthru
        _
      %p170 = scmp.le.s32.totalorder 1, %s17
      %p171 = scmp.lt.s32.totalorder %s17, 3
      %p172 = pnand %p170, %p171
      %p173 = pneg %p172
      // Predicated region
      $region25: #{tpu_custom_call.1} parent=5 // pred_check
        _
      $region26: #{tpu_custom_call.1} parent=5 // pred_check_branch
        %175 = sbr.rel (%p172) target = $region28
      $region27: #{tpu_custom_call.1} parent=5 // pred_region
        %s176 = ssub.s32 %s17, 1
        %s177 = sand.u32 %s44, 1
        %s178 = scalar_lea.sflag [#allocation3], %s177
        %s179 = sand.u32 %s44, 1
        %s180 = smul.addr %s179, 8
        %s181 = scalar_lea.vmem [#allocation2], %s180
        // Predicated region
        $region29: #{tpu_custom_call.1} parent=27 // pred_check
          %p182 = pneg %p57
        $region30: #{tpu_custom_call.1} parent=27 // pred_check_branch
          %184 = sbr.rel (%p182) target = $region32
        $region31: #{tpu_custom_call.1} parent=27 // pred_region
          %186 = dma.done %s178, 128
        $region32: #{tpu_custom_call.1} parent=27 // pred_fallthru
          _
        %s187 = sand.u32 %s72, 1
        %s188 = scalar_lea.sflag [#allocation6], %s187
        %s189 = sand.u32 %s72, 1
        %s190 = smul.addr %s189, 8
        %s191 = scalar_lea.vmem [#allocation5], %s190
        // Predicated region
        $region33: #{tpu_custom_call.1} parent=27 // pred_check
          %p192 = pneg %p85
        $region34: #{tpu_custom_call.1} parent=27 // pred_check_branch
          %194 = sbr.rel (%p192) target = $region36
        $region35: #{tpu_custom_call.1} parent=27 // pred_region
          %196 = dma.done %s188, 128
        $region36: #{tpu_custom_call.1} parent=27 // pred_fallthru
          _
        %s197 = sand.u32 %s44, 1
        %s198 = scalar_lea.sflag [#allocation3], %s197
        %s199 = sand.u32 %s44, 1
        %s200 = smul.addr %s199, 8
        %s201 = scalar_lea.vmem [#allocation2], %s200
        %p202 = pneg %p57
        %p203 = pneg %p54
        %s204 = sand.u32 %s72, 1
        %s205 = scalar_lea.sflag [#allocation6], %s204
        %s206 = sand.u32 %s72, 1
        %s207 = smul.addr %s206, 8
        %s208 = scalar_lea.vmem [#allocation5], %s207
        %p209 = pneg %p85
        %p210 = pneg %p82
        %p211 = pneg %p111
        %p212 = pneg %p108
        %s213 = sand.u32 %s98, 1
        %s214 = scalar_lea.sflag [#allocation4], %s213
        %s215 = sand.u32 %s98, 1
        %s216 = smul.addr %s215, 8
        %s217 = scalar_lea.vmem [#allocation7], %s216
        %s218 = sadd.s32 %s26, %s27
        %s219 = sadd.s32 %s26, %s27
        %p220 = scmp.eq.s32.totalorder %s27, 0
        // Predicated region
        $region37: #{tpu_custom_call.1} parent=27 // pred_check
          %p221 = pneg %p220
        $region38: #{tpu_custom_call.1} parent=27 // pred_check_branch
          %223 = sbr.rel (%p221) target = $region40
        $region39: #{tpu_custom_call.1} parent=27 // pred_region
          %224 = vst [vmem:[%s217] sm:$0xff] 0.0
        $region40: #{tpu_custom_call.1} parent=27 // pred_fallthru
          _
        %v225 = vld [vmem:[%s181] sm:$0xff]
        %v226 = vld [vmem:[%s191] sm:$0xff]
        %v227 = vmul.f32 %v226, 0.9
        %v228 = vadd.f32 %v227, 0.05
        %v229 = vmax.f32 %v225, 0.0
        %v230 = vmul.f32 %v225, %v228
        %v231 = vsub.f32 %v229, %v230
        %v232 = vand.u32 2147483647, %v225
        %v233 = vsub.f32 0.0, %v232
        %v234 = vmul.f32 %v233, 1.442695
        %v235 = vpow.pop %v234
        %v236 = vadd.f32 %v235, 1.0
        %v237 = vlog2.pop %v236
        %v238 = vmul.f32 %v237, 0.6931472
        %v239 = vmul.f32 -0.5, %v235
        %v240 = vadd.f32 %v239, 1.0
        %v241 = vmul.f32 %v240, %v235
        %v242 = vand.u32 2147483647, %v235
        %vm243 = vcmp.lt.f32.partialorder %v242, 0.0004427343
        %v244 = vsel %vm243, %v241, %v238
        %v245 = vadd.f32 %v231, %v244
        %v246 = vsub.f32 0.0, %v245
        %v247 = vmul.f32 %v246, 1.442695
        %v248 = vpow.pop %v247
        %v249 = vsub.f32 1.0, %v248
        %v250 = vmul.f32 %v249, %v249
        %v251 = vmul.f32 %v250, 0.25
        %v252 = vmul.f32 %v251, %v245
        %v253 = vld [vmem:[%s217] sm:$0xff]
        %v254 = vadd.f32 %v252, 0.0
        %v255 = vadd.f32 %v253, %v254
        %256 = vst [vmem:[%s217] sm:$0xff] %v255
        %s257 = sand.u32 %s98, 1
        %s258 = scalar_lea.sflag [#allocation4], %s257
        %s259 = sand.u32 %s98, 1
        %s260 = smul.addr %s259, 8
        %s261 = scalar_lea.vmem [#allocation7], %s260
        // Predicated region
        $region41: #{tpu_custom_call.1} parent=27 // pred_check
          %p262 = pneg %p108
        $region42: #{tpu_custom_call.1} parent=27 // pred_check_branch
          %264 = sbr.rel (%p262) target = $region44
        $region43: #{tpu_custom_call.1} parent=27 // pred_region
          %266 = vsyncadd %s258, 0
          %s267 = smul.addr %s26, 8
          %s268 = scalar_lea.hbm %s2, %s267
          %s270 = sshll.u32 %s261, 4
          %s271 = int_to_ptr.vmem [resolvable:$true] %s270
          %s272 = sshll.u32 %s268, 4
          %s273 = int_to_ptr.hbm [resolvable:$true] %s272
          %275 = dma.vmem_to_hbm [thread:$0]  %s271, 128, %s273, %s258
        $region44: #{tpu_custom_call.1} parent=27 // pred_fallthru
          _
      $region28: #{tpu_custom_call.1} parent=5 // pred_fallthru
        _
      %p276 = scmp.le.s32.totalorder 2, %s17
      // Predicated region
      $region45: #{tpu_custom_call.1} parent=5 // pred_check
        %p277 = pneg %p276
      $region46: #{tpu_custom_call.1} parent=5 // pred_check_branch
        %279 = sbr.rel (%p277) target = $region48
      $region47: #{tpu_custom_call.1} parent=5 // pred_region
        %s280 = ssub.s32 %s17, 2
        // Predicated region
        $region49: #{tpu_custom_call.1} parent=47 // pred_check
          %p281 = pneg %p114
        $region50: #{tpu_custom_call.1} parent=47 // pred_check_branch
          %283 = sbr.rel (%p281) target = $region52
        $region51: #{tpu_custom_call.1} parent=47 // pred_region
          %s284 = sand.u32 %s99, 1
          %s285 = scalar_lea.sflag [#allocation4], %s284
          %s286 = sand.u32 %s99, 1
          %s287 = smul.addr %s286, 8
          %s288 = scalar_lea.vmem [#allocation7], %s287
          %290 = dma.done %s285, 128
        $region52: #{tpu_custom_call.1} parent=47 // pred_fallthru
          _
      $region48: #{tpu_custom_call.1} parent=5 // pred_fallthru
        _
    $region6: #{tpu_custom_call.1} parent=1 // loop_footer
      %s21 = sadd.s32 1, %s17
    $region7: #{tpu_custom_call.1} parent=1 // loop_footer_branch
      %16 = sbr.rel target = $region3
    $region8: #{tpu_custom_call.1} parent=1 // loop_exit
      _
    %291 = vsyncpa [#allocation3], 1
    %s292 = scalar_lea.sflag [#allocation3], 1
    %293 = vsyncpa %s292, 1
    %294 = vsyncpa [#allocation6], 1
    %s295 = scalar_lea.sflag [#allocation6], 1
    %296 = vsyncpa %s295, 1
    %297 = vsyncpa [#allocation4], 1
    %s298 = scalar_lea.sflag [#allocation4], 1
    %299 = vsyncpa %s298, 1

</llo_original>
